<compile_context>
chip_gen: v7x
topology: tpu7x:2x2x1
jax: 0.10.0
libtpu: 0.0.40
codegen_flags: <defaults>
</compile_context>

<pallas_src>
import warnings

import jax
import jax.numpy as jnp
from jax.experimental import pallas as pl
from jax.experimental.pallas import tpu as pltpu


_LANE = 128          # TPU lane width
_SUBLANE_F32 = 8     # f32 sublane packing
_MXU_M = 256         # MXU-friendly M multiple (v6e/v7x systolic array)

_BUF_OK = None       # cached Buffered(1) support probe


def _round_up(n, m):
    return ((n + m - 1) // m) * m


def _buffered_single_supported():
    """Probe whether pl.BlockSpec accepts pipeline_mode=pl.Buffered(1)."""
    global _BUF_OK
    if _BUF_OK is None:
        try:
            pl.BlockSpec((8, 128), lambda i, k: (0, 0),
                         pipeline_mode=pl.Buffered(1))
            _BUF_OK = True
        except TypeError:
            _BUF_OK = False
            warnings.warn(
                "pl.Buffered(1) not supported by this JAX version: resident "
                "weight blocks will be double-buffered; tile sizing adjusted.")
    return _BUF_OK


def _tpu_hw_info():
    """(vmem_capacity_bytes, num_tensorcores) with conservative fallbacks."""
    vmem_cap = 64 << 20      # v7x per-TC capacity: safe lower bound everywhere
    cores = 1
    try:
        info = pltpu.get_tpu_info()
        v = getattr(info, "vmem_capacity_bytes", None)
        if v:
            vmem_cap = int(v)
        for attr in ("num_cores", "core_count", "num_tensorcores",
                     "tensorcore_count"):
            c = getattr(info, attr, None)
            if c:
                cores = max(1, min(int(c), 8))
                break
    except Exception:
        pass
    return vmem_cap, cores


# ----------------------------------------------------------------------------
# Kernel: fused (K-tiled) encoder-MLP + folded classification head.
# ----------------------------------------------------------------------------
def _ts_classifier_kernel(x_ref, w1_ref, b1_ref, w2_ref, b2_ref, out_ref,
                          acc_ref):
    """One (batch-tile, K-chunk) grid step.

    x_ref : (tb, tk)     f32  -> cast to bf16 in-kernel (hidden under MXU)
    w1    : (tk, Dh)     bf16       b1 : (1, Dh) f32
    w2    : (Dh, Dc)     f32        b2 : (1, Dc) f32   (Wmu @ Whead folded)
    out   : (tb, Dc)     f32        acc: (tb, Dh) f32 scratch
    """
    k = pl.program_id(1)

    @pl.when(k == 0)
    def _init():
        acc_ref[...] = jnp.zeros_like(acc_ref)

    acc_ref[...] += jnp.dot(
        x_ref[...].astype(jnp.bfloat16), w1_ref[...],
        preferred_element_type=jnp.float32)

    @pl.when(k == pl.num_programs(1) - 1)
    def _finalize():
        h = jnp.maximum(acc_ref[...] + b1_ref[...], 0.0)
        y = jnp.dot(h, w2_ref[...], preferred_element_type=jnp.float32)
        out_ref[...] = (y + b2_ref[...]).astype(out_ref.dtype)


# ----------------------------------------------------------------------------
# One-time (model-load) weight preparation.
# ----------------------------------------------------------------------------
def prepare_params(params, in_dim):
    """Fold the head into the mean projection, pad to lane multiples, cast W1
    to bf16, and decide the K-tiling of W1.  Call ONCE at model-load time."""
    w1, b1 = params["w1"], params["b1"]
    wmu, bmu = params["wmu"], params["bmu"]
    wh, bh = params["wh"], params["bh"]
    hidden, n_classes = w1.shape[1], wh.shape[1]

    # No nonlinearity between `mean` and the head, so fold the two linears:
    #   logits = (h1 @ Wmu + bmu) @ Wh + bh = h1 @ (Wmu @ Wh) + (bmu @ Wh + bh)
    w2 = wmu @ wh                       # f32 fold (kept f32 for accuracy)
    b2 = bmu @ wh + bh

    din_p = _round_up(in_dim, _LANE)
    dh_p = _round_up(hidden, _LANE)
    dc_p = _round_up(n_classes, _LANE)

    # --- K tiling of W1: only when it would not stay resident in VMEM ------
    vmem_cap, _ = _tpu_hw_info()
    budget = vmem_cap // 2
    w1_copies = 1 if _buffered_single_supported() else 2
    if w1_copies * din_p * dh_p * 2 <= budget // 2:
        tk = din_p                       # fully resident, single grid K-step
    else:
        chunk_budget = budget * 3 // 10  # double-buffered W1 chunk share
        tk = max(_LANE, (chunk_budget // (2 * dh_p * 2) // _LANE) * _LANE)
        tk = min(tk, din_p)
        din_p = _round_up(din_p, tk)     # so tk divides the padded K exactly

    # Zero padding keeps padded rows/cols exact (zeros, never NaN).
    w1_p = jnp.zeros((din_p, dh_p), jnp.bfloat16)
    w1_p = w1_p.at[:in_dim, :hidden].set(w1.astype(jnp.bfloat16))
    b1_p = jnp.zeros((1, dh_p), jnp.float32).at[0, :hidden].set(b1)
    w2_p = jnp.zeros((dh_p, dc_p), jnp.float32)
    w2_p = w2_p.at[:hidden, :n_classes].set(w2)
    b2_p = jnp.zeros((1, dc_p), jnp.float32).at[0, :n_classes].set(b2)

    return {"w1": w1_p, "b1": b1_p, "w2": w2_p, "b2": b2_p,
            "in_dim": int(in_dim), "n_classes": int(n_classes), "tk": int(tk)}


# ----------------------------------------------------------------------------
# Forward pass.
# ----------------------------------------------------------------------------
def ts_classifier_forward(x, prepped):
    """x: (B, C, T) float32.  Returns logits (B, n_classes) float32.

    Close over `prepped` when jitting (its ints are static tiling metadata)."""
    B = x.shape[0]
    in_dim = prepped["in_dim"]
    n_classes = prepped["n_classes"]
    tk = prepped["tk"]
    w1_p, b1_p, w2_p, b2_p = (prepped["w1"], prepped["b1"],
                              prepped["w2"], prepped["b2"])
    din_p, dh_p = w1_p.shape
    dc_p = w2_p.shape[1]
    nk = din_p // tk

    vmem_cap, num_cores = _tpu_hw_info()
    budget = vmem_cap // 2
    buffered_ok = _buffered_single_supported()

    # ---- VMEM accounting ----------------------------------------------------
    w1_copies = 1 if (nk == 1 and buffered_ok) else 2
    wcopies = 1 if buffered_ok else 2
    resident = (w1_copies * tk * dh_p * 2                     # W1 chunk (bf16)
                + wcopies * (dh_p * dc_p * 4 + dh_p * 4 + dc_p * 4))
    per_row = 2 * tk * 4 + 2 * dc_p * 4 + dh_p * 4  # x dbl-buf + out dbl-buf + acc
    tb_vmem_max = (budget - resident) // max(per_row, 1)
    tb_vmem_max = max(_SUBLANE_F32,
                      (tb_vmem_max // _SUBLANE_F32) * _SUBLANE_F32)

    # ---- batch tile: MXU-sized when B permits, VMEM-bounded -----------------
    b_ru = _round_up(B, _SUBLANE_F32)
    if b_ru <= _MXU_M:
        tb_want = b_ru                   # tiny batch: one tile, no forced split
    else:
        # at least `num_cores` tiles (feeds v7x's 2nd TC), each MXU-sized
        per_core = pl.cdiv(b_ru, max(num_cores, 1))
        tb_want = max(_MXU_M, (per_core // _MXU_M) * _MXU_M)
    tb = min(tb_want, tb_vmem_max)
    if tb >= _MXU_M:
        tb = (tb // _MXU_M) * _MXU_M
    tb = max(_SUBLANE_F32, (tb // _SUBLANE_F32) * _SUBLANE_F32)

    b_pad = _round_up(B, tb)
    nb = b_pad // tb
    grid = (nb, nk)

    # ---- input: flatten + zero-pad (f32; bf16 cast happens in-kernel) -------
    x_flat = x.reshape(B, -1).astype(jnp.float32)
    assert x_flat.shape[1] == in_dim, "input feature dim mismatch"
    if b_pad != B or din_p != in_dim:
        # Padded K columns MUST be zero (relying on W1's zero rows alone is
        # unsafe: uninitialized data could be NaN and NaN*0 = NaN).
        x_flat = jnp.pad(x_flat, ((0, b_pad - B), (0, din_p - in_dim)))

    # ---- specs ---------------------------------------------------------------
    def _const_spec(shape):
        idx = lambda i, k: (0,) * len(shape)
        if buffered_ok:
            return pl.BlockSpec(shape, idx, pipeline_mode=pl.Buffered(1))
        return pl.BlockSpec(shape, idx)

    if nk == 1:
        w1_spec = _const_spec((din_p, dh_p))
    else:
        w1_spec = pl.BlockSpec((tk, dh_p), lambda i, k: (k, 0))

    vmem_need = resident + tb * per_row
    vmem_limit = int(min(max(2 * vmem_need + (8 << 20), 32 << 20),
                         (vmem_cap * 5) // 8))

    cost = pl.CostEstimate(
        flops=2 * b_pad * (din_p * dh_p + dh_p * dc_p),
        transcendentals=0,
        bytes_accessed=(b_pad * din_p * 4            # x (f32, read once)
                        + din_p * dh_p * 2           # W1 bf16
                        + dh_p * dc_p * 4            # W2 f32
                        + dh_p * 4 + dc_p * 4        # biases
                        + b_pad * dc_p * 4),         # logits out
    )

    out = pl.pallas_call(
        _ts_classifier_kernel,
        out_shape=jax.ShapeDtypeStruct((b_pad, dc_p), jnp.float32),
        grid_spec=pltpu.PrefetchScalarGridSpec(
            num_scalar_prefetch=0,
            grid=grid,
            in_specs=[
                pl.BlockSpec((tb, tk), lambda i, k: (i, k)),   # x batch/K tile
                w1_spec,                                        # W1 (chunk)
                _const_spec((1, dh_p)),                         # b1
                _const_spec((dh_p, dc_p)),                      # W2 (folded, f32)
                _const_spec((1, dc_p)),                         # b2
            ],
            out_specs=pl.BlockSpec((tb, dc_p), lambda i, k: (i, 0)),
            scratch_shapes=[pltpu.VMEM((tb, dh_p), jnp.float32)],
        ),
        compiler_params=pltpu.CompilerParams(
            dimension_semantics=("parallel", "arbitrary"),
            vmem_limit_bytes=vmem_limit,
        ),
        cost_estimate=cost,
    )(x_flat, w1_p, b1_p, w2_p, b2_p)

    return out[:B, :n_classes]


# ----------------------------------------------------------------------------
# Synthetic parameters + plain-JAX reference.
# ----------------------------------------------------------------------------
def init_params(key, in_dim, hidden, latent, n_classes):
    """Deterministic synthetic parameters (no checkpoint loading)."""
    k1, k2, k3, k4, k5, k6 = jax.random.split(key, 6)
    s1 = 1.0 / jnp.sqrt(in_dim)
    s2 = 1.0 / jnp.sqrt(hidden)
    s3 = 1.0 / jnp.sqrt(latent)
    return {
        "w1": jax.random.uniform(k1, (in_dim, hidden), jnp.float32, -s1, s1),
        "b1": jax.random.uniform(k2, (hidden,), jnp.float32, -s1, s1),
        "wmu": jax.random.uniform(k3, (hidden, latent), jnp.float32, -s2, s2),
        "bmu": jax.random.uniform(k4, (latent,), jnp.float32, -s2, s2),
        "wh": jax.random.uniform(k5, (latent, n_classes), jnp.float32, -s3, s3),
        "bh": jax.random.uniform(k6, (n_classes,), jnp.float32, -s3, s3),
    }


def reference_forward(x, params):
    """Plain-JAX f32 reference of the same forward (un-fused, un-folded)."""
    B, C, T = x.shape
    xf = x.reshape(B, C * T)
    h1 = jnp.maximum(xf @ params["w1"] + params["b1"], 0.0)
    mean = h1 @ params["wmu"] + params["bmu"]
    return mean @ params["wh"] + params["bh"]


if __name__ == "__main__":
    # Small shapes: batch=2, channels=4, time-steps=16, hidden=32,
    # latent=16, n_classes=5.
    B, C, T = 2, 4, 16
    HIDDEN, LATENT, N_CLASSES = 32, 16, 5

    key = jax.random.PRNGKey(0)
    kx, kp = jax.random.split(key)
    x = jax.random.normal(kx, (B, C, T), dtype=jnp.float32)
    params = init_params(kp, C * T, HIDDEN, LATENT, N_CLASSES)

    # One-time model-load prep (head fold, padding, bf16 W1, K-tile choice).
    prepped = prepare_params(params, C * T)
    # Close over prepped so its static ints stay Python ints under jit.
    forward = jax.jit(lambda xx: ts_classifier_forward(xx, prepped))

    logits = jax.block_until_ready(forward(x))

    ref = reference_forward(x, params)
    assert logits.shape == (B, N_CLASSES)
    # Error comes only from bf16 x/W1 in the first matmul (W2/b2 kept f32).
    err = float(jnp.max(jnp.abs(logits - ref)))
    assert jnp.allclose(logits, ref, atol=5e-2, rtol=5e-2), err

    print("KERNEL_OK")
</pallas_src>

<mosaic_0001>
module attributes {stable_mosaic.version = 11 : i64} {
  func.func @_ts_classifier_kernel(%arg0: i32, %arg1: i32, %arg2: memref<8x128xf32, #tpu.memory_space<vmem>>, %arg3: memref<128x128xbf16, #tpu.memory_space<vmem>>, %arg4: memref<1x128xf32, #tpu.memory_space<vmem>>, %arg5: memref<128x128xf32, #tpu.memory_space<vmem>>, %arg6: memref<1x128xf32, #tpu.memory_space<vmem>>, %arg7: memref<8x128xf32, #tpu.memory_space<vmem>>, %arg8: memref<8x128xf32, #tpu.memory_space<vmem>>) attributes {dimension_semantics = [#tpu.dimension_semantics<parallel>, #tpu.dimension_semantics<arbitrary>], iteration_bounds = array<i64: 1, 1>, scalar_prefetch = 0 : i64, scratch_operands = 1 : i64, tpu.core_type = #tpu.core_type<tc>, window_params = [{transform_indices = @transform_0, window_bounds = array<i64: 8, 128>}, {pipeline_mode = #tpu.pipeline_mode<synchronous>, transform_indices = @transform_1, window_bounds = array<i64: 128, 128>}, {pipeline_mode = #tpu.pipeline_mode<synchronous>, transform_indices = @transform_2, window_bounds = array<i64: 1, 128>}, {pipeline_mode = #tpu.pipeline_mode<synchronous>, transform_indices = @transform_3, window_bounds = array<i64: 128, 128>}, {pipeline_mode = #tpu.pipeline_mode<synchronous>, transform_indices = @transform_4, window_bounds = array<i64: 1, 128>}, {transform_indices = @transform_5, window_bounds = array<i64: 8, 128>}]} {
    %c0_i32 = arith.constant 0 : i32
    %0 = arith.cmpi eq, %arg1, %c0_i32 : i32
    %1 = arith.extui %0 : i1 to i32
    %c0_i32_0 = arith.constant 0 : i32
    %2 = arith.cmpi ne, %1, %c0_i32_0 : i32
    scf.if %2 {
      %cst_10 = arith.constant 0.000000e+00 : f32
      %13 = vector.broadcast %cst_10 : f32 to vector<8x128xf32>
      %c0_11 = arith.constant 0 : index
      %c0_12 = arith.constant 0 : index
      %14 = vector.load %arg8[%c0_11, %c0_12] : memref<8x128xf32, #tpu.memory_space<vmem>>, vector<8x128xf32>
      tpu.vector_store %arg8[%c0_11, %c0_12], %13 {strides = array<i32>} : memref<8x128xf32, #tpu.memory_space<vmem>>, vector<8x128xf32>,
    } else {
    }
    %c0 = arith.constant 0 : index
    %c0_1 = arith.constant 0 : index
    %3 = vector.load %arg8[%c0, %c0_1] : memref<8x128xf32, #tpu.memory_space<vmem>>, vector<8x128xf32>
    %c0_2 = arith.constant 0 : index
    %c0_3 = arith.constant 0 : index
    %4 = vector.load %arg2[%c0_2, %c0_3] : memref<8x128xf32, #tpu.memory_space<vmem>>, vector<8x128xf32>
    %5 = arith.truncf %4 : vector<8x128xf32> to vector<8x128xbf16>
    %c0_4 = arith.constant 0 : index
    %c0_5 = arith.constant 0 : index
    %6 = vector.load %arg3[%c0_4, %c0_5] : memref<128x128xbf16, #tpu.memory_space<vmem>>, vector<128x128xbf16>
    %cst = arith.constant dense<0.000000e+00> : vector<8x128xf32>
    %7 = tpu.matmul %5, %6, %cst {dimension_numbers = #tpu.dot_dimension_numbers<[1], [0], [0], [1], [0, 0, 1, 1], [], []>} : vector<8x128xbf16>, vector<128x128xbf16>, vector<8x128xf32> -> vector<8x128xf32>
    %8 = arith.addf %3, %7 : vector<8x128xf32>
    %c0_6 = arith.constant 0 : index
    %c0_7 = arith.constant 0 : index
    %9 = vector.load %arg8[%c0_6, %c0_7] : memref<8x128xf32, #tpu.memory_space<vmem>>, vector<8x128xf32>
    tpu.vector_store %arg8[%c0_6, %c0_7], %8 {strides = array<i32>} : memref<8x128xf32, #tpu.memory_space<vmem>>, vector<8x128xf32>,
    %c0_i32_8 = arith.constant 0 : i32
    %10 = arith.cmpi eq, %arg1, %c0_i32_8 : i32
    %11 = arith.extui %10 : i1 to i32
    %c0_i32_9 = arith.constant 0 : i32
    %12 = arith.cmpi ne, %11, %c0_i32_9 : i32
    scf.if %12 {
      %c0_10 = arith.constant 0 : index
      %c0_11 = arith.constant 0 : index
      %13 = vector.load %arg8[%c0_10, %c0_11] : memref<8x128xf32, #tpu.memory_space<vmem>>, vector<8x128xf32>
      %c0_12 = arith.constant 0 : index
      %c0_13 = arith.constant 0 : index
      %14 = vector.load %arg4[%c0_12, %c0_13] : memref<1x128xf32, #tpu.memory_space<vmem>>, vector<1x128xf32>
      %15 = vector.broadcast %14 : vector<1x128xf32> to vector<8x128xf32>
      %16 = arith.addf %13, %15 : vector<8x128xf32>
      %cst_14 = arith.constant 0.000000e+00 : f32
      %17 = vector.broadcast %cst_14 : f32 to vector<8x128xf32>
      %18 = arith.maximumf %16, %17 : vector<8x128xf32>
      %c0_15 = arith.constant 0 : index
      %c0_16 = arith.constant 0 : index
      %19 = vector.load %arg5[%c0_15, %c0_16] : memref<128x128xf32, #tpu.memory_space<vmem>>, vector<128x128xf32>
      %cst_17 = arith.constant dense<0.000000e+00> : vector<8x128xf32>
      %20 = tpu.matmul %18, %19, %cst_17 {dimension_numbers = #tpu.dot_dimension_numbers<[1], [0], [0], [1], [0, 0, 1, 1], [], []>} : vector<8x128xf32>, vector<128x128xf32>, vector<8x128xf32> -> vector<8x128xf32>
      %c0_18 = arith.constant 0 : index
      %c0_19 = arith.constant 0 : index
      %21 = vector.load %arg6[%c0_18, %c0_19] : memref<1x128xf32, #tpu.memory_space<vmem>>, vector<1x128xf32>
      %22 = vector.broadcast %21 : vector<1x128xf32> to vector<8x128xf32>
      %23 = arith.addf %20, %22 : vector<8x128xf32>
      %c0_20 = arith.constant 0 : index
      %c0_21 = arith.constant 0 : index
      %24 = vector.load %arg7[%c0_20, %c0_21] : memref<8x128xf32, #tpu.memory_space<vmem>>, vector<8x128xf32>
      tpu.vector_store %arg7[%c0_20, %c0_21], %23 {strides = array<i32>} : memref<8x128xf32, #tpu.memory_space<vmem>>, vector<8x128xf32>,
    } else {
    }
    return
  }
  func.func @transform_0(%arg0: i32, %arg1: i32) -> (i32, i32) {
    %c0_i32 = arith.constant 0 : i32
    return %arg0, %arg1 : i32, i32
  }
  func.func @transform_1(%arg0: i32, %arg1: i32) -> (i32, i32) {
    %c0_i32 = arith.constant 0 : i32
    %c0_i32_0 = arith.constant 0 : i32
    %c0_i32_1 = arith.constant 0 : i32
    return %c0_i32, %c0_i32_0 : i32, i32
  }
  func.func @transform_2(%arg0: i32, %arg1: i32) -> (i32, i32) {
    %c0_i32 = arith.constant 0 : i32
    %c0_i32_0 = arith.constant 0 : i32
    %c0_i32_1 = arith.constant 0 : i32
    return %c0_i32, %c0_i32_0 : i32, i32
  }
  func.func @transform_3(%arg0: i32, %arg1: i32) -> (i32, i32) {
    %c0_i32 = arith.constant 0 : i32
    %c0_i32_0 = arith.constant 0 : i32
    %c0_i32_1 = arith.constant 0 : i32
    return %c0_i32, %c0_i32_0 : i32, i32
  }
  func.func @transform_4(%arg0: i32, %arg1: i32) -> (i32, i32) {
    %c0_i32 = arith.constant 0 : i32
    %c0_i32_0 = arith.constant 0 : i32
    %c0_i32_1 = arith.constant 0 : i32
    return %c0_i32, %c0_i32_0 : i32, i32
  }
  func.func @transform_5(%arg0: i32, %arg1: i32) -> (i32, i32) {
    %c0_i32 = arith.constant 0 : i32
    %c0_i32_0 = arith.constant 0 : i32
    return %arg0, %c0_i32 : i32, i32
  }
}

</mosaic_0001>

<llo_original>
// kernel: _lambda_.1
$region0: #{_lambda_.1}
  #allocation0 [shape = 'u32[]', space=smem, size = 0x4, offset = 0x4, fixed_abs, tag = 'smem constant byte address 0x4 - core index']
  #allocation1 [shape = 'u32[144,128]{1,0:T(1,128)}', space=vmem, size = 0x12000, scoped, tag = 'internal scratch']
  #allocation2 [shape = 'f32[8,128]{1,0:T(8,128)}', space=vmem, size = 0x1000, scoped, tag = 'scratch operand']
  %s0 = inlined_call_operand.vmem [shape: f32[8,128], index: 0, kind: input, shape index: {}]
  %s1 = inlined_call_operand.hbm [shape: bf16[128,128], index: 1, kind: input, shape index: {}]
  %s2 = inlined_call_operand.vmem [shape: f32[1,128], index: 2, kind: input, shape index: {}]
  %s3 = inlined_call_operand.hbm [shape: f32[128,128], index: 3, kind: input, shape index: {}]
  %s4 = inlined_call_operand.vmem [shape: f32[1,128], index: 4, kind: input, shape index: {}]
  %s5 = inlined_call_operand.vmem [shape: f32[8,128], index: 5, kind: output, shape index: {}]
  %s6 = sld [smem:[#allocation0]]
  $region46: #{_lambda_.1} parent=0
    _
  %s8 = ssub.s32 1, %s6
  %s9 = scalar_select 0, %s8, %s6
  $region1: #{_lambda_.1} parent=0
    #allocation3 [shape = 'u8[32768]{0}', space=vmem, size = 0x8000, scoped, tag = 'input window, operand 1, single buffered']
    #allocation4 [shape = 's32[1]{0}', space=sflag, size = 0x4, scoped, tag = 'scoped memory for _lambda_.1']
    #allocation5 [shape = 'u8[65536]{0}', space=vmem, size = 0x10000, scoped, tag = 'input window, operand 3, single buffered']
    #allocation6 [shape = 's32[1]{0}', space=sflag, size = 0x4, scoped, tag = 'scoped memory for _lambda_.1']
    %10 = vsyncpa [#allocation4], 0
    %11 = vsyncpa [#allocation6], 0
    // Predicated region
    $region2: #{_lambda_.1} parent=1 // pred_check
      _
    $region3: #{_lambda_.1} parent=1 // pred_check_branch
      %13 = sbr.rel (0) target = $region5
    $region4: #{_lambda_.1} parent=1 // pred_region
      _
    $region5: #{_lambda_.1} parent=1 // pred_fallthru
      _
    // Predicated region
    $region6: #{_lambda_.1} parent=1 // pred_check
      _
    $region7: #{_lambda_.1} parent=1 // pred_check_branch
      %15 = sbr.rel (0) target = $region9
    $region8: #{_lambda_.1} parent=1 // pred_region
      %s17 = ssub.s32 1024, 1024
      %18 = vsyncadd [#allocation4], %s17
      %s19 = sshll.u32 [#allocation3], 4
      %s20 = int_to_ptr.vmem [resolvable:$true] %s19
      %25 = dma.hbm_to_vmem [thread:$0]  %s1, 1024, %s20, [#allocation4], 64, 64, 4
    $region9: #{_lambda_.1} parent=1 // pred_fallthru
      _
    // Predicated region
    $region10: #{_lambda_.1} parent=1 // pred_check
      _
    $region11: #{_lambda_.1} parent=1 // pred_check_branch
      %27 = sbr.rel (0) target = $region13
    $region12: #{_lambda_.1} parent=1 // pred_region
      _
    $region13: #{_lambda_.1} parent=1 // pred_fallthru
      _
    // Predicated region
    $region14: #{_lambda_.1} parent=1 // pred_check
      _
    $region15: #{_lambda_.1} parent=1 // pred_check_branch
      %29 = sbr.rel (0) target = $region17
    $region16: #{_lambda_.1} parent=1 // pred_region
      %s31 = ssub.s32 2048, 2048
      %32 = vsyncadd [#allocation6], %s31
      %s33 = sshll.u32 [#allocation5], 4
      %s34 = int_to_ptr.vmem [resolvable:$true] %s33
      %39 = dma.hbm_to_vmem [thread:$0]  %s3, 2048, %s34, [#allocation6], 128, 128, 8
    $region17: #{_lambda_.1} parent=1 // pred_fallthru
      _
    // Predicated region
    $region18: #{_lambda_.1} parent=1 // pred_check
      _
    $region19: #{_lambda_.1} parent=1 // pred_check_branch
      %41 = sbr.rel (0) target = $region21
    $region20: #{_lambda_.1} parent=1 // pred_region
      _
    $region21: #{_lambda_.1} parent=1 // pred_fallthru
      _
    // Predicated region
    $region22: #{_lambda_.1} parent=1 // pred_check
      _
    $region23: #{_lambda_.1} parent=1 // pred_check_branch
      %43 = sbr.rel (0) target = $region25
    $region24: #{_lambda_.1} parent=1 // pred_region
      %44 = dma.done [#allocation4], 1024
    $region25: #{_lambda_.1} parent=1 // pred_fallthru
      _
    // Predicated region
    $region26: #{_lambda_.1} parent=1 // pred_check
      _
    $region27: #{_lambda_.1} parent=1 // pred_check_branch
      %46 = sbr.rel (0) target = $region29
    $region28: #{_lambda_.1} parent=1 // pred_region
      %47 = dma.done [#allocation6], 2048
    $region29: #{_lambda_.1} parent=1 // pred_fallthru
      _
    %p49 = scmp.eq.s32.totalorder 0, 0
    // Predicated region
    $region30: #{_lambda_.1} parent=1 // pred_check
      %p50 = pneg %p49
    $region31: #{_lambda_.1} parent=1 // pred_check_branch
      %52 = sbr.rel (%p50) target = $region33
    $region32: #{_lambda_.1} parent=1 // pred_region
      %53 = vst [vmem:[#allocation2] sm:$0xff] 0.0
    $region33: #{_lambda_.1} parent=1 // pred_fallthru
      _
    %v54 = vld [vmem:[#allocation2] sm:$0xff]
    %v55 = vld [vmem:[%s0] sm:$0xff]
    %v56 = vpack.c.bf16 %v55, %v55
    %v57 = vld [vmem:[#allocation3] sm:$0xf]
    %v58 = vld [vmem:[#allocation3 + $0x4] sm:$0xf]
    %v59 = vld [vmem:[#allocation3 + $0x8] sm:$0xf]
    %v60 = vld [vmem:[#allocation3 + $0xc] sm:$0xf]
    %v61 = vld [vmem:[#allocation3 + $0x10] sm:$0xf]
    %v62 = vld [vmem:[#allocation3 + $0x14] sm:$0xf]
    %v63 = vld [vmem:[#allocation3 + $0x18] sm:$0xf]
    %v64 = vld [vmem:[#allocation3 + $0x1c] sm:$0xf]
    %v65 = vld [vmem:[#allocation3 + $0x20] sm:$0xf]
    %v66 = vld [vmem:[#allocation3 + $0x24] sm:$0xf]
    %v67 = vld [vmem:[#allocation3 + $0x28] sm:$0xf]
    %v68 = vld [vmem:[#allocation3 + $0x2c] sm:$0xf]
    %v69 = vld [vmem:[#allocation3 + $0x30] sm:$0xf]
    %v70 = vld [vmem:[#allocation3 + $0x34] sm:$0xf]
    %v71 = vld [vmem:[#allocation3 + $0x38] sm:$0xf]
    %v72 = vld [vmem:[#allocation3 + $0x3c] sm:$0xf]
    %v89 = vunpack.c.l.b16 %v57
    %v90 = vunpack.c.l.b16 %v58
    %v91 = vunpack.c.l.b16 %v59
    %v92 = vunpack.c.l.b16 %v60
    %v93 = vunpack.c.l.b16 %v61
    %v94 = vunpack.c.l.b16 %v62
    %v95 = vunpack.c.l.b16 %v63
    %v96 = vunpack.c.l.b16 %v64
    %v97 = vunpack.c.l.b16 %v65
    %v98 = vunpack.c.l.b16 %v66
    %v99 = vunpack.c.l.b16 %v67
    %v100 = vunpack.c.l.b16 %v68
    %v101 = vunpack.c.l.b16 %v69
    %v102 = vunpack.c.l.b16 %v70
    %v103 = vunpack.c.l.b16 %v71
    %v104 = vunpack.c.l.b16 %v72
    %v105 = vpack.c.b16 %v90, %v89
    %v106 = vpack.c.b16 %v92, %v91
    %v107 = vpack.c.b16 %v94, %v93
    %v108 = vpack.c.b16 %v96, %v95
    %v109 = vpack.c.b16 %v98, %v97
    %v110 = vpack.c.b16 %v100, %v99
    %v111 = vpack.c.b16 %v102, %v101
    %v112 = vpack.c.b16 %v104, %v103
    %121 = vmatprep.subr.bf16.mxu0 0
    %122 = vmatpush1.bf16.msra.mxu0 %v105
    %123 = vmatprep.subr.bf16.mxu0 0
    %124 = vmatpush1.bf16.msra.mxu0 %v106
    %125 = vmatprep.subr.bf16.mxu0 0
    %126 = vmatpush1.bf16.msra.mxu0 %v107
    %127 = vmatprep.subr.bf16.mxu0 0
    %128 = vmatpush1.bf16.msra.mxu0 %v108
    %129 = vmatprep.subr.bf16.mxu0 0
    %130 = vmatpush1.bf16.msra.mxu0 %v109
    %131 = vmatprep.subr.bf16.mxu0 0
    %132 = vmatpush1.bf16.msra.mxu0 %v110
    %133 = vmatprep.subr.bf16.mxu0 0
    %134 = vmatpush1.bf16.msra.mxu0 %v111
    %135 = vmatprep.subr.bf16.mxu0 0
    %136 = vmatpush1.bf16.msra.mxu0 %v112
    %137 = vmatprep.subr.bf16.mxu0 0
    %138 = vmatpush1.bf16.msra.mxu0 0
    %139 = vmatprep.subr.bf16.mxu0 0
    %140 = vmatpush1.bf16.msra.mxu0 0
    %141 = vmatprep.subr.bf16.mxu0 0
    %142 = vmatpush1.bf16.msra.mxu0 0
    %143 = vmatprep.subr.bf16.mxu0 0
    %144 = vmatpush1.bf16.msra.mxu0 0
    %145 = vmatprep.subr.bf16.mxu0 0
    %146 = vmatpush1.bf16.msra.mxu0 0
    %147 = vmatprep.subr.bf16.mxu0 0
    %148 = vmatpush1.bf16.msra.mxu0 0
    %149 = vmatprep.subr.bf16.mxu0 0
    %150 = vmatpush1.bf16.msra.mxu0 0
    %151 = vmatprep.subr.bf16.mxu0 0
    %152 = vmatpush1.bf16.msra.mxu0 0
    %153 = vmatprep.mubr.bf16.mxu0 0
    %154 = vmatmul.mubr.bf16.gmra.mrb[0].mxu0 %v56
    %v155 = vpop.f32.mrb[0].mxu0
    %v156 = vadd.f32 0.0, %v155
    %v157 = vpop.f32.mrb[0].mxu0
    %v158 = vpop.f32.mrb[0].mxu0
    %v159 = vpop.f32.mrb[0].mxu0
    %160 = vdwg.mxu0
    %v161 = vadd.f32 %v54, %v156
    %162 = vst [vmem:[#allocation2] sm:$0xff] %v161
    // Predicated region
    $region34: #{_lambda_.1} parent=1 // pred_check
      %p163 = pneg %p49
    $region35: #{_lambda_.1} parent=1 // pred_check_branch
      %165 = sbr.rel (%p163) target = $region37
    $region36: #{_lambda_.1} parent=1 // pred_region
      %v166 = vld [vmem:[#allocation2] sm:$0xff]
      %v167 = vld [vmem:[%s2] sm:$0x1]
      %v169 = vlaneseq
      %v170 = vshrl.u32 %v169, 7
      %v171 = vsub.s32 0, %v170
      %v172 = vrot.slane %v167, %v171
      %v174 = vadd.f32 %v166, %v172
      %v175 = vmax.f32 %v174, 0.0
      %v176 = vld [vmem:[#allocation5] sm:$0xff]
      %v177 = vld [vmem:[#allocation5 + $0x8] sm:$0xff]
      %v178 = vld [vmem:[#allocation5 + $0x10] sm:$0xff]
      %v179 = vld [vmem:[#allocation5 + $0x18] sm:$0xff]
      %v180 = vld [vmem:[#allocation5 + $0x20] sm:$0xff]
      %v181 = vld [vmem:[#allocation5 + $0x28] sm:$0xff]
      %v182 = vld [vmem:[#allocation5 + $0x30] sm:$0xff]
      %v183 = vld [vmem:[#allocation5 + $0x38] sm:$0xff]
      %v184 = vld [vmem:[#allocation5 + $0x40] sm:$0xff]
      %v185 = vld [vmem:[#allocation5 + $0x48] sm:$0xff]
      %v186 = vld [vmem:[#allocation5 + $0x50] sm:$0xff]
      %v187 = vld [vmem:[#allocation5 + $0x58] sm:$0xff]
      %v188 = vld [vmem:[#allocation5 + $0x60] sm:$0xff]
      %v189 = vld [vmem:[#allocation5 + $0x68] sm:$0xff]
      %v190 = vld [vmem:[#allocation5 + $0x70] sm:$0xff]
      %v191 = vld [vmem:[#allocation5 + $0x78] sm:$0xff]
      %v192 = vld [vmem:[%s4] sm:$0x1]
      %v194 = vlaneseq
      %v195 = vshrl.u32 %v194, 7
      %v196 = vsub.s32 0, %v195
      %v197 = vrot.slane %v192, %v196
      %199 = vmatprep.subr.mxu0 0.0
      %200 = vmatpush1.msra.mxu0 %v176
      %201 = vmatprep.subr.mxu0 0.0
      %202 = vmatpush1.msra.mxu0 %v177
      %203 = vmatprep.subr.mxu0 0.0
      %204 = vmatpush1.msra.mxu0 %v178
      %205 = vmatprep.subr.mxu0 0.0
      %206 = vmatpush1.msra.mxu0 %v179
      %207 = vmatprep.subr.mxu0 0.0
      %208 = vmatpush1.msra.mxu0 %v180
      %209 = vmatprep.subr.mxu0 0.0
      %210 = vmatpush1.msra.mxu0 %v181
      %211 = vmatprep.subr.mxu0 0.0
      %212 = vmatpush1.msra.mxu0 %v182
      %213 = vmatprep.subr.mxu0 0.0
      %214 = vmatpush1.msra.mxu0 %v183
      %215 = vmatprep.subr.mxu0 0.0
      %216 = vmatpush1.msra.mxu0 %v184
      %217 = vmatprep.subr.mxu0 0.0
      %218 = vmatpush1.msra.mxu0 %v185
      %219 = vmatprep.subr.mxu0 0.0
      %220 = vmatpush1.msra.mxu0 %v186
      %221 = vmatprep.subr.mxu0 0.0
      %222 = vmatpush1.msra.mxu0 %v187
      %223 = vmatprep.subr.mxu0 0.0
      %224 = vmatpush1.msra.mxu0 %v188
      %225 = vmatprep.subr.mxu0 0.0
      %226 = vmatpush1.msra.mxu0 %v189
      %227 = vmatprep.subr.mxu0 0.0
      %228 = vmatpush1.msra.mxu0 %v190
      %229 = vmatprep.subr.mxu0 0.0
      %230 = vmatpush1.msra.mxu0 %v191
      %231 = vmatprep.subr.mxu0 0.0
      %232 = vmatpush1.msra.mxu0 0.0
      %233 = vmatprep.subr.mxu0 0.0
      %234 = vmatpush1.msra.mxu0 0.0
      %235 = vmatprep.subr.mxu0 0.0
      %236 = vmatpush1.msra.mxu0 0.0
      %237 = vmatprep.subr.mxu0 0.0
      %238 = vmatpush1.msra.mxu0 0.0
      %239 = vmatprep.subr.mxu0 0.0
      %240 = vmatpush1.msra.mxu0 0.0
      %241 = vmatprep.subr.mxu0 0.0
      %242 = vmatpush1.msra.mxu0 0.0
      %243 = vmatprep.subr.mxu0 0.0
      %244 = vmatpush1.msra.mxu0 0.0
      %245 = vmatprep.subr.mxu0 0.0
      %246 = vmatpush1.msra.mxu0 0.0
      %247 = vmatprep.subr.mxu0 0.0
      %248 = vmatpush1.msra.mxu0 0.0
      %249 = vmatprep.subr.mxu0 0.0
      %250 = vmatpush1.msra.mxu0 0.0
      %251 = vmatprep.subr.mxu0 0.0
      %252 = vmatpush1.msra.mxu0 0.0
      %253 = vmatprep.subr.mxu0 0.0
      %254 = vmatpush1.msra.mxu0 0.0
      %255 = vmatprep.subr.mxu0 0.0
      %256 = vmatpush1.msra.mxu0 0.0
      %257 = vmatprep.subr.mxu0 0.0
      %258 = vmatpush1.msra.mxu0 0.0
      %259 = vmatprep.subr.mxu0 0.0
      %260 = vmatpush1.msra.mxu0 0.0
      %261 = vmatprep.subr.mxu0 0.0
      %262 = vmatpush1.msra.mxu0 0.0
      %263 = vmatprep.mubr.f32.mxu0 0.0
      %264 = vmatmul.mubr.f32.gmra.mrb[0].mxu0 %v175
      %v265 = vpop.f32.mrb[0].mxu0
      %v266 = vadd.f32 %v197, %v265
      %v267 = vpop.f32.mrb[0].mxu0
      %268 = vdwg.mxu0
      %269 = vst [vmem:[%s5] sm:$0xff] %v266
    $region37: #{_lambda_.1} parent=1 // pred_fallthru
      _
    // Predicated region
    $region38: #{_lambda_.1} parent=1 // pred_check
      _
    $region39: #{_lambda_.1} parent=1 // pred_check_branch
      %271 = sbr.rel (0) target = $region41
    $region40: #{_lambda_.1} parent=1 // pred_region
      _
    $region41: #{_lambda_.1} parent=1 // pred_fallthru
      _
    // Predicated region
    $region42: #{_lambda_.1} parent=1 // pred_check
      _
    $region43: #{_lambda_.1} parent=1 // pred_check_branch
      %273 = sbr.rel (0) target = $region45
    $region44: #{_lambda_.1} parent=1 // pred_region
      _
    $region45: #{_lambda_.1} parent=1 // pred_fallthru
      _
    %274 = vsyncpa [#allocation4], 1
    %275 = vsyncpa [#allocation6], 1

</llo_original>
